<compile_context>
chip_gen: v6e
topology: v6e:2x2x1
jax: 0.10.0
libtpu: 0.0.40
codegen_flags: <defaults>
</compile_context>

<pallas_src>
import functools

import jax
import jax.numpy as jnp
import numpy as np
from jax import lax
from jax.experimental import pallas as pl
from jax.experimental.pallas import tpu as pltpu


def _round_up(x: int, m: int) -> int:
    return ((x + m - 1) // m) * m


def _cdiv(a: int, b: int) -> int:
    return -(-a // b)


def _make_ola_kernel(*, nframes: int, frame_size: int, step: int, k: int,
                     k_full: int, rem: int, tile_hops: int, halo: int):
    """Per-tile OLA kernel.

    Refs:
      cur_ref : (tile_hops, frame_size)  frames starting at frame g*tile_hops
      halo_ref: (halo,      frame_size)  the `halo` frames just before the tile
      out_ref : (tile_hops, step)        output hop tile (input dtype)
    """

    def phase_slab(ref, rows, j):
        # Lane slice of phase j, zero-extended to `step` lanes, rolled down by j
        # sublanes so that row h holds the contribution of frame (h - j).
        w = min(step, frame_size - j * step)
        slab = ref[:, pl.ds(j * step, w)].astype(jnp.float32)
        if w < step:
            slab = jnp.concatenate(
                [slab, jnp.zeros((rows, step - w), jnp.float32)], axis=1)
        if j > 0:
            slab = pltpu.roll(slab, shift=j, axis=0)
        return slab

    def kernel(cur_ref, halo_ref, out_ref):
        g = pl.program_id(0)
        row = lax.broadcasted_iota(jnp.int32, (tile_hops, 1), 0)
        hop = g * tile_hops + row                      # absolute hop index per row

        # ---- bulk accumulation: contributions sourced from this tile's frames ----
        acc = None
        for j in range(k):                             # k is small; unrolled
            slab = phase_slab(cur_ref, tile_hops, j)
            # row >= j      : rolled-in wrapped rows (and rows fed by the halo) excluded
            # hop - j < nframes: ragged tail of the last tile excluded
            valid = (row >= j) & (hop - j < nframes)
            contrib = jnp.where(valid, slab, 0.0)
            acc = contrib if acc is None else acc + contrib

        # ---- halo: the first k-1 rows also need frames from before this tile ----
        if k > 1:
            hrow = lax.broadcasted_iota(jnp.int32, (halo, 1), 0)
            hhop = g * tile_hops + hrow
            hacc = jnp.zeros((halo, step), jnp.float32)
            for j in range(1, k):
                slab = phase_slab(halo_ref, halo, j)   # row h<j <- halo[halo-j+h]
                f = hhop - j                           # frame feeding this row
                valid = (hrow < j) & (f >= 0) & (f < nframes)
                hacc = hacc + jnp.where(valid, slab, 0.0)

        # ---- normalization: analytic per-row overlap counts, exact reciprocal ----
        if k_full > 0:
            j_hi = jnp.minimum(hop, k_full - 1)
            j_lo = jnp.maximum(hop - (nframes - 1), 0)
            cnt = jnp.maximum(j_hi - j_lo + 1, 0)      # (tile_hops, 1) int32
        else:
            cnt = jnp.zeros_like(hop)
        # clamp >= 1: samples no frame covers (frame_shift > frame_size) and the
        # padded tail come out as 0 instead of the 0/0 NaN of the PyTorch loop.
        if rem > 0:
            p_ok = (hop >= k - 1) & (hop - (k - 1) < nframes)
            inv_in = 1.0 / jnp.maximum(cnt + p_ok.astype(jnp.int32), 1).astype(jnp.float32)
            inv_out = 1.0 / jnp.maximum(cnt, 1).astype(jnp.float32)
            lane = lax.broadcasted_iota(jnp.int32, (1, step), 1)
            inv = jnp.where(lane < rem, inv_in, inv_out)
        else:
            inv = 1.0 / jnp.maximum(cnt, 1).astype(jnp.float32)

        # ---- lane-dense, sublane-aligned stores (one or two per tile) ----
        if k > 1:
            out_ref[pl.ds(0, halo), :] = (
                (acc[:halo] + hacc) * inv[:halo]).astype(out_ref.dtype)
            if tile_hops > halo:
                out_ref[pl.ds(halo, tile_hops - halo), :] = (
                    acc[halo:] * inv[halo:]).astype(out_ref.dtype)
        else:
            out_ref[...] = (acc * inv).astype(out_ref.dtype)

    return kernel


@functools.partial(jax.jit, static_argnames=("frame_shift", "hop_tile"))
def torch_ola(inputs: jax.Array, frame_shift: int = 1024, hop_tile=None) -> jax.Array:
    """JAX/Pallas equivalent of TorchOLA.forward.

    inputs: (1, 1, nframes, frame_size); returns (1, sig_length) with
    sig_length = (nframes - 1) * frame_shift + frame_size, in the input dtype.
    `hop_tile` optionally caps the number of hop rows per grid step (tests).
    """
    x = jnp.squeeze(inputs, axis=1)                    # (B, nframes, frame_size)
    assert x.shape[0] == 1, "TorchOLA semantics require batch == 1 (sig is (1, L))"
    frames = x[0]
    nframes, frame_size = frames.shape
    step = int(frame_shift)

    k = _cdiv(frame_size, step)                        # phases per hop
    k_full = frame_size // step                        # full-width phases
    rem = frame_size - k_full * step                   # lanes covered by the partial phase
    n_hops = nframes + k - 1                           # hop rows covering the signal
    sig_length = (nframes - 1) * step + frame_size

    itemsize = jnp.dtype(frames.dtype).itemsize
    sub_mult = max(8, 32 // max(itemsize, 1))          # sublane packing (f32:8, bf16:16)
    halo = _round_up(max(k - 1, 1), sub_mult)          # history frames a tile may need

    # ---- tile sizing against this chip's VMEM (v5e/v6e: 128 MiB, v7x: 64 MiB/TC) ----
    try:
        vmem_cap = int(pltpu.get_tpu_info().vmem_capacity_bytes)
    except Exception:  # pragma: no cover - conservative fallback
        vmem_cap = 64 << 20
    vmem_limit = min(vmem_cap * 3 // 4, 64 << 20)      # scoped-VMEM request
    budget = (vmem_limit * 3) // 5                     # headroom for spills/temps
    bytes_per_hop = (2 * frame_size * itemsize         # double-buffered frame tile
                     + 2 * step * itemsize             # double-buffered output tile
                     + 3 * step * 4)                   # in-kernel f32 temporaries
    cap_hops = max(halo, ((budget // bytes_per_hop) // halo) * halo)
    if hop_tile is not None:
        cap_hops = min(cap_hops, _round_up(int(hop_tile), halo))
    hops_ceil = _round_up(n_hops, halo)
    tile_hops = max(halo, min(cap_hops, hops_ceil))
    if tile_hops >= hops_ceil and hops_ceil >= 2 * halo:
        # keep >= 2 grid steps so BlockSpec double-buffering and the two-TensorCore
        # grid split actually engage.
        tile_hops = _round_up(_cdiv(n_hops, 2), halo)
    num_tiles = _cdiv(n_hops, tile_hops)
    rows_pad = num_tiles * tile_hops

    # Tiny-input fallback only: keep every BlockSpec window inside the array.
    frames_arr = frames
    nrows = nframes
    min_rows = max(tile_hops, halo)
    if nrows < min_rows:
        frames_arr = jnp.pad(frames_arr, ((0, min_rows - nrows), (0, 0)))
        nrows = min_rows

    cur_blocks = _cdiv(nrows, tile_hops)
    halo_blocks = _cdiv(nrows, halo)
    hbb = tile_hops // halo

    kernel = _make_ola_kernel(nframes=nframes, frame_size=frame_size, step=step,
                              k=k, k_full=k_full, rem=rem,
                              tile_hops=tile_hops, halo=halo)

    # TODO(synk): if profiling shows exposed input DMA, add pipeline_mode=pl.Buffered(3)
    # to the frames BlockSpec (re-check the VMEM budget first).
    out = pl.pallas_call(
        kernel,
        out_shape=jax.ShapeDtypeStruct((rows_pad, step), frames.dtype),
        grid=(num_tiles,),
        in_specs=[
            # frames feeding this hop tile (frame index == hop index for phase 0);
            # the last tile may start past nframes -> clamp to the last valid block
            # (its data is fully masked in-kernel anyway).
            pl.BlockSpec((tile_hops, frame_size),
                         lambda g: (jnp.minimum(g, cur_blocks - 1), 0)),
            # tiny halo: the `halo` frames just before the tile (clamped at tile 0)
            pl.BlockSpec((halo, frame_size),
                         lambda g: (jnp.minimum(jnp.maximum(g * hbb - 1, 0),
                                                halo_blocks - 1), 0)),
        ],
        out_specs=pl.BlockSpec((tile_hops, step), lambda g: (g, 0)),
        compiler_params=pltpu.CompilerParams(
            dimension_semantics=("parallel",),         # shard tiles across TCs (v7x)
            vmem_limit_bytes=int(vmem_limit),
        ),
    )(frames_arr, frames_arr)

    # Layout plumbing only: (hops, step) hop slab -> flat signal -> trim padding.
    sig = out.reshape(1, rows_pad * step)[:, :sig_length]
    return sig


def _ref_ola(frames: np.ndarray, frame_step: int) -> np.ndarray:
    """Pure numpy reference mirroring the PyTorch loop exactly."""
    nframes, frame_size = frames.shape
    sig_length = (nframes - 1) * frame_step + frame_size
    sig = np.zeros((1, sig_length), dtype=np.float64)
    ones = np.zeros((1, sig_length), dtype=np.float64)
    start, end = 0, frame_size
    for i in range(nframes):
        sig[..., start:end] += frames[i, :]
        ones[..., start:end] += 1.0
        start += frame_step
        end = start + frame_size
    return (sig / ones).astype(frames.dtype)


if __name__ == "__main__":
    key = jax.random.PRNGKey(0)
    configs = [
        # (nframes, frame_size, frame_shift, hop_tile)
        (64, 256, 128, 16),    # 50% overlap (k=2): 5 tiles, halo + clamped last block
        (24, 512, 128, 8),     # 75% overlap (k=4): last tile fed entirely by the halo
        (10, 200, 128, 8),     # frame_size % frame_shift != 0 (partial-lane phase)
        (40, 256, 128, None),  # automatic (VMEM-derived) tile sizing path
    ]
    for nframes, frame_size, frame_shift, hop_tile in configs:
        key, sub = jax.random.split(key)
        x = jax.random.normal(sub, (1, 1, nframes, frame_size), dtype=jnp.float32)
        y = jax.block_until_ready(
            torch_ola(x, frame_shift=frame_shift, hop_tile=hop_tile))
        y_ref = _ref_ola(np.asarray(x[0, 0]), frame_shift)
        assert y.shape == y_ref.shape, (y.shape, y_ref.shape)
        np.testing.assert_allclose(np.asarray(y), y_ref, rtol=1e-5, atol=1e-5)
    print("KERNEL_OK")
</pallas_src>

<mosaic_0001>
module attributes {stable_mosaic.version = 11 : i64} {
  func.func @kernel(%arg0: i32, %arg1: memref<16x256xf32, #tpu.memory_space<vmem>>, %arg2: memref<8x256xf32, #tpu.memory_space<vmem>>, %arg3: memref<16x128xf32, #tpu.memory_space<vmem>>) attributes {dimension_semantics = [#tpu.dimension_semantics<parallel>], iteration_bounds = array<i64: 5>, scalar_prefetch = 0 : i64, scratch_operands = 0 : i64, tpu.core_type = #tpu.core_type<tc>, window_params = [{transform_indices = @transform_0, window_bounds = array<i64: 16, 256>}, {transform_indices = @transform_1, window_bounds = array<i64: 8, 256>}, {transform_indices = @transform_2, window_bounds = array<i64: 16, 128>}]} {
    %0 = tpu.iota {dimensions = array<i32: 0>} : vector<16x1xi32>
    %c16_i32 = arith.constant 16 : i32
    %1 = arith.muli %arg0, %c16_i32 : i32
    %2 = vector.broadcast %1 : i32 to vector<16x1xi32>
    %3 = arith.addi %2, %0 : vector<16x1xi32>
    %c0 = arith.constant 0 : index
    %c0_0 = arith.constant 0 : index
    %4 = vector.load %arg1[%c0, %c0_0] : memref<16x256xf32, #tpu.memory_space<vmem>>, vector<16x128xf32>
    %c0_i32 = arith.constant 0 : i32
    %5 = vector.broadcast %c0_i32 : i32 to vector<16x1xi32>
    %6 = arith.cmpi sge, %0, %5 : vector<16x1xi32>
    %c0_i32_1 = arith.constant 0 : i32
    %7 = vector.broadcast %c0_i32_1 : i32 to vector<16x1xi32>
    %8 = arith.subi %3, %7 : vector<16x1xi32>
    %c64_i32 = arith.constant 64 : i32
    %9 = vector.broadcast %c64_i32 : i32 to vector<16x1xi32>
    %10 = arith.cmpi slt, %8, %9 : vector<16x1xi32>
    %11 = arith.andi %6, %10 : vector<16x1xi1>
    %cst = arith.constant 0.000000e+00 : f32
    %12 = vector.shape_cast %11 : vector<16x1xi1> to vector<16x1xi1>
    %13 = vector.broadcast %12 : vector<16x1xi1> to vector<16x128xi1>
    %14 = vector.broadcast %cst : f32 to vector<16x128xf32>
    %15 = arith.select %13, %4, %14 : vector<16x128xi1>, vector<16x128xf32>
    %c0_2 = arith.constant 0 : index
    %c128 = arith.constant 128 : index
    %16 = vector.load %arg1[%c0_2, %c128] : memref<16x256xf32, #tpu.memory_space<vmem>>, vector<16x128xf32>
    %c1_i32 = arith.constant 1 : i32
    %17 = tpu.dynamic_rotate %16 by %c1_i32 dim 0 : vector<16x128xf32>, i32 -> vector<16x128xf32>
    %c1_i32_3 = arith.constant 1 : i32
    %18 = vector.broadcast %c1_i32_3 : i32 to vector<16x1xi32>
    %19 = arith.cmpi sge, %0, %18 : vector<16x1xi32>
    %c1_i32_4 = arith.constant 1 : i32
    %20 = vector.broadcast %c1_i32_4 : i32 to vector<16x1xi32>
    %21 = arith.subi %3, %20 : vector<16x1xi32>
    %c64_i32_5 = arith.constant 64 : i32
    %22 = vector.broadcast %c64_i32_5 : i32 to vector<16x1xi32>
    %23 = arith.cmpi slt, %21, %22 : vector<16x1xi32>
    %24 = arith.andi %19, %23 : vector<16x1xi1>
    %cst_6 = arith.constant 0.000000e+00 : f32
    %25 = vector.shape_cast %24 : vector<16x1xi1> to vector<16x1xi1>
    %26 = vector.broadcast %25 : vector<16x1xi1> to vector<16x128xi1>
    %27 = vector.broadcast %cst_6 : f32 to vector<16x128xf32>
    %28 = arith.select %26, %17, %27 : vector<16x128xi1>, vector<16x128xf32>
    %29 = arith.addf %15, %28 : vector<16x128xf32>
    %30 = tpu.iota {dimensions = array<i32: 0>} : vector<8x1xi32>
    %c16_i32_7 = arith.constant 16 : i32
    %31 = arith.muli %arg0, %c16_i32_7 : i32
    %32 = vector.broadcast %31 : i32 to vector<8x1xi32>
    %33 = arith.addi %32, %30 : vector<8x1xi32>
    %cst_8 = arith.constant 0.000000e+00 : f32
    %34 = vector.broadcast %cst_8 : f32 to vector<8x128xf32>
    %c0_9 = arith.constant 0 : index
    %c128_10 = arith.constant 128 : index
    %35 = vector.load %arg2[%c0_9, %c128_10] : memref<8x256xf32, #tpu.memory_space<vmem>>, vector<8x128xf32>
    %c1_i32_11 = arith.constant 1 : i32
    %36 = tpu.dynamic_rotate %35 by %c1_i32_11 dim 0 : vector<8x128xf32>, i32 -> vector<8x128xf32>
    %c1_i32_12 = arith.constant 1 : i32
    %37 = vector.broadcast %c1_i32_12 : i32 to vector<8x1xi32>
    %38 = arith.subi %33, %37 : vector<8x1xi32>
    %c1_i32_13 = arith.constant 1 : i32
    %39 = vector.broadcast %c1_i32_13 : i32 to vector<8x1xi32>
    %40 = arith.cmpi slt, %30, %39 : vector<8x1xi32>
    %c0_i32_14 = arith.constant 0 : i32
    %41 = vector.broadcast %c0_i32_14 : i32 to vector<8x1xi32>
    %42 = arith.cmpi sge, %38, %41 : vector<8x1xi32>
    %43 = arith.andi %40, %42 : vector<8x1xi1>
    %c64_i32_15 = arith.constant 64 : i32
    %44 = vector.broadcast %c64_i32_15 : i32 to vector<8x1xi32>
    %45 = arith.cmpi slt, %38, %44 : vector<8x1xi32>
    %46 = arith.andi %43, %45 : vector<8x1xi1>
    %cst_16 = arith.constant 0.000000e+00 : f32
    %47 = vector.shape_cast %46 : vector<8x1xi1> to vector<8x1xi1>
    %48 = vector.broadcast %47 : vector<8x1xi1> to vector<8x128xi1>
    %49 = vector.broadcast %cst_16 : f32 to vector<8x128xf32>
    %50 = arith.select %48, %36, %49 : vector<8x128xi1>, vector<8x128xf32>
    %51 = arith.addf %34, %50 : vector<8x128xf32>
    %c1_i32_17 = arith.constant 1 : i32
    %52 = vector.broadcast %c1_i32_17 : i32 to vector<16x1xi32>
    %53 = arith.minsi %3, %52 : vector<16x1xi32>
    %c63_i32 = arith.constant 63 : i32
    %54 = vector.broadcast %c63_i32 : i32 to vector<16x1xi32>
    %55 = arith.subi %3, %54 : vector<16x1xi32>
    %c0_i32_18 = arith.constant 0 : i32
    %56 = vector.broadcast %c0_i32_18 : i32 to vector<16x1xi32>
    %57 = arith.maxsi %55, %56 : vector<16x1xi32>
    %58 = arith.subi %53, %57 : vector<16x1xi32>
    %c1_i32_19 = arith.constant 1 : i32
    %59 = vector.broadcast %c1_i32_19 : i32 to vector<16x1xi32>
    %60 = arith.addi %58, %59 : vector<16x1xi32>
    %c0_i32_20 = arith.constant 0 : i32
    %61 = vector.broadcast %c0_i32_20 : i32 to vector<16x1xi32>
    %62 = arith.maxsi %60, %61 : vector<16x1xi32>
    %c1_i32_21 = arith.constant 1 : i32
    %63 = vector.broadcast %c1_i32_21 : i32 to vector<16x1xi32>
    %64 = arith.maxsi %62, %63 : vector<16x1xi32>
    %65 = arith.sitofp %64 : vector<16x1xi32> to vector<16x1xf32>
    %cst_22 = arith.constant 1.000000e+00 : f32
    %66 = vector.broadcast %cst_22 : f32 to vector<16x1xf32>
    %67 = arith.divf %66, %65 : vector<16x1xf32>
    %68 = vector.extract_strided_slice %29 {offsets = [0, 0], sizes = [8, 128], strides = [1, 1]} : vector<16x128xf32> to vector<8x128xf32>
    %69 = arith.addf %68, %51 : vector<8x128xf32>
    %70 = vector.extract_strided_slice %67 {offsets = [0, 0], sizes = [8, 1], strides = [1, 1]} : vector<16x1xf32> to vector<8x1xf32>
    %71 = vector.broadcast %70 : vector<8x1xf32> to vector<8x128xf32>
    %72 = arith.mulf %69, %71 : vector<8x128xf32>
    %c0_23 = arith.constant 0 : index
    %c0_24 = arith.constant 0 : index
    %73 = vector.load %arg3[%c0_23, %c0_24] : memref<16x128xf32, #tpu.memory_space<vmem>>, vector<8x128xf32>
    tpu.vector_store %arg3[%c0_23, %c0_24], %72 {strides = array<i32>} : memref<16x128xf32, #tpu.memory_space<vmem>>, vector<8x128xf32>,
    %74 = vector.extract_strided_slice %29 {offsets = [8, 0], sizes = [8, 128], strides = [1, 1]} : vector<16x128xf32> to vector<8x128xf32>
    %75 = vector.extract_strided_slice %67 {offsets = [8, 0], sizes = [8, 1], strides = [1, 1]} : vector<16x1xf32> to vector<8x1xf32>
    %76 = vector.broadcast %75 : vector<8x1xf32> to vector<8x128xf32>
    %77 = arith.mulf %74, %76 : vector<8x128xf32>
    %c8 = arith.constant 8 : index
    %c0_25 = arith.constant 0 : index
    %78 = vector.load %arg3[%c8, %c0_25] : memref<16x128xf32, #tpu.memory_space<vmem>>, vector<8x128xf32>
    tpu.vector_store %arg3[%c8, %c0_25], %77 {strides = array<i32>} : memref<16x128xf32, #tpu.memory_space<vmem>>, vector<8x128xf32>,
    return
  }
  func.func @transform_0(%arg0: i32) -> (i32, i32) {
    %c3_i32 = arith.constant 3 : i32
    %0 = arith.minsi %arg0, %c3_i32 : i32
    %c0_i32 = arith.constant 0 : i32
    %c0_i32_0 = arith.constant 0 : i32
    return %0, %c0_i32 : i32, i32
  }
  func.func @transform_1(%arg0: i32) -> (i32, i32) {
    %c2_i32 = arith.constant 2 : i32
    %0 = arith.muli %arg0, %c2_i32 : i32
    %c1_i32 = arith.constant 1 : i32
    %1 = arith.subi %0, %c1_i32 : i32
    %c0_i32 = arith.constant 0 : i32
    %2 = arith.maxsi %1, %c0_i32 : i32
    %c7_i32 = arith.constant 7 : i32
    %3 = arith.minsi %2, %c7_i32 : i32
    %c0_i32_0 = arith.constant 0 : i32
    %c0_i32_1 = arith.constant 0 : i32
    return %3, %c0_i32_0 : i32, i32
  }
  func.func @transform_2(%arg0: i32) -> (i32, i32) {
    %c0_i32 = arith.constant 0 : i32
    %c0_i32_0 = arith.constant 0 : i32
    return %arg0, %c0_i32 : i32, i32
  }
}

</mosaic_0001>

<llo_original>
// kernel: torch_ola.1
$region0: #{torch_ola.1}
  #allocation0 [shape = 'u32[]', space=smem, size = 0x4, offset = 0x4, fixed_abs, tag = 'smem constant byte address 0x4 - core index']
  #allocation1 [shape = 'u32[144,128]{1,0:T(1,128)}', space=vmem, size = 0x12000, scoped, tag = 'internal scratch']
  %s0 = inlined_call_operand.hbm [shape: f32[64,256], index: 0, kind: input, shape index: {}, may-alias: {0,1}]
  %s1 = inlined_call_operand.hbm [shape: f32[64,256], index: 1, kind: input, shape index: {}, may-alias: {0,1}]
  %s2 = inlined_call_operand.vmem [shape: f32[80,128], index: 2, kind: output, shape index: {}]
  %s3 = sld [smem:[#allocation0]]
  $region49: #{torch_ola.1} parent=0
    _
  %s5 = ssub.s32 1, %s3
  %s6 = scalar_select 0, %s5, %s3
  $region1: #{torch_ola.1} parent=0
    #allocation2 [shape = 'u8[32768]{0}', space=vmem, size = 0x8000, scoped, tag = 'input window, operand 0']
    #allocation3 [shape = 's32[2]{0}', space=sflag, size = 0x8, scoped, tag = 'scoped memory for torch_ola.1']
    #allocation4 [shape = 'u8[16384]{0}', space=vmem, size = 0x4000, scoped, tag = 'input window, operand 1']
    #allocation5 [shape = 's32[2]{0}', space=sflag, size = 0x8, scoped, tag = 'scoped memory for torch_ola.1']
    %7 = vsyncpa [#allocation3], 0
    %s8 = scalar_lea.sflag [#allocation3], 1
    %9 = vsyncpa %s8, 0
    %10 = vsyncpa [#allocation5], 0
    %s11 = scalar_lea.sflag [#allocation5], 1
    %12 = vsyncpa %s11, 0
    loop: start=0, step=1, limit=7
    $region2: #{torch_ola.1} parent=1 // loop_pre_header
      _
    $region3: #{torch_ola.1} parent=1 // loop_header
      %s14 = sphi 0, %s18
      %p15 = scmp.ge.s32.totalorder %s14, 7
      %s28 = sphi 0, %s30
      %s31 = sphi 0, %s28
      %s32 = sphi 0, %s31
      %s48 = sphi 0, %s32
      %s66 = sphi 0, %s68
      %s69 = sphi 0, %s66
      %s70 = sphi 0, %s69
      %s86 = sphi 0, %s70
      %s92 = sphi 0, %s94
      %s95 = sphi 0, %s92
      %s96 = sphi 0, %s95
      %s112 = sphi 0, %s96
    $region4: #{torch_ola.1} parent=1 // loop_header_branch
      %17 = sbr.rel (%p15) target = $region8
    $region5: #{torch_ola.1} parent=1 // loop_body
      %s19 = ssub.s32 %s14, 1
      %s20 = ssub.s32 %s14, 2
      %s21 = sadd.s32 %s14, 1
      %p22 = scmp.lt.s32.totalorder %s14, 3
      %s23 = scalar_select %p22, %s14, 3
      %p24 = scmp.lt.s32.totalorder %s21, 3
      %s25 = scalar_select %p24, %s21, 3
      %s26 = ssub.s32 %s23, %s25
      %p27 = scmp.eq.s32.totalorder %s26, 0
      %s29 = sadd.s32 %s28, 1
      %s30 = scalar_select %p27, %s28, %s29
      %p33 = pneg %p27
      %p34 = scmp.eq.s32.totalorder %s14, 4
      %p35 = por %p33, %p34
      %p36 = scmp.ne.s32.totalorder %s28, %s31
      %p37 = scmp.eq.s32.totalorder %s14, 0
      %p38 = por %p36, %p37
      %p39 = scmp.ne.s32.totalorder %s28, %s31
      %p40 = scmp.eq.s32.totalorder %s19, 4
      %p41 = por %p39, %p40
      %p42 = scmp.ne.s32.totalorder %s31, %s32
      %p43 = scmp.eq.s32.totalorder %s19, 0
      %p44 = por %p42, %p43
      %p45 = scmp.ne.s32.totalorder %s31, %s32
      %p46 = scmp.eq.s32.totalorder %s20, 4
      %p47 = por %p45, %p46
      %p49 = scmp.ne.s32.totalorder %s32, %s48
      %p50 = scmp.eq.s32.totalorder %s20, 0
      %p51 = por %p49, %p50
      %s52 = smul.u32 %s14, 2
      %s53 = ssub.s32 %s52, 1
      %p54 = scmp.gt.s32.totalorder %s53, 0
      %s55 = scalar_select %p54, %s53, 0
      %p56 = scmp.lt.s32.totalorder %s55, 7
      %s57 = scalar_select %p56, %s55, 7
      %s58 = smul.u32 %s21, 2
      %s59 = ssub.s32 %s58, 1
      %p60 = scmp.gt.s32.totalorder %s59, 0
      %s61 = scalar_select %p60, %s59, 0
      %p62 = scmp.lt.s32.totalorder %s61, 7
      %s63 = scalar_select %p62, %s61, 7
      %s64 = ssub.s32 %s57, %s63
      %p65 = scmp.eq.s32.totalorder %s64, 0
      %s67 = sadd.s32 %s66, 1
      %s68 = scalar_select %p65, %s66, %s67
      %p71 = pneg %p65
      %p72 = scmp.eq.s32.totalorder %s14, 4
      %p73 = por %p71, %p72
      %p74 = scmp.ne.s32.totalorder %s66, %s69
      %p75 = scmp.eq.s32.totalorder %s14, 0
      %p76 = por %p74, %p75
      %p77 = scmp.ne.s32.totalorder %s66, %s69
      %p78 = scmp.eq.s32.totalorder %s19, 4
      %p79 = por %p77, %p78
      %p80 = scmp.ne.s32.totalorder %s69, %s70
      %p81 = scmp.eq.s32.totalorder %s19, 0
      %p82 = por %p80, %p81
      %p83 = scmp.ne.s32.totalorder %s69, %s70
      %p84 = scmp.eq.s32.totalorder %s20, 4
      %p85 = por %p83, %p84
      %p87 = scmp.ne.s32.totalorder %s70, %s86
      %p88 = scmp.eq.s32.totalorder %s20, 0
      %p89 = por %p87, %p88
      %s90 = ssub.s32 %s14, %s21
      %p91 = scmp.eq.s32.totalorder %s90, 0
      %s93 = sadd.s32 %s92, 1
      %s94 = scalar_select %p91, %s92, %s93
      %p97 = pneg %p91
      %p98 = scmp.eq.s32.totalorder %s14, 4
      %p99 = por %p97, %p98
      %p100 = scmp.ne.s32.totalorder %s92, %s95
      %p101 = scmp.eq.s32.totalorder %s14, 0
      %p102 = por %p100, %p101
      %p103 = scmp.ne.s32.totalorder %s92, %s95
      %p104 = scmp.eq.s32.totalorder %s19, 4
      %p105 = por %p103, %p104
      %p106 = scmp.ne.s32.totalorder %s95, %s96
      %p107 = scmp.eq.s32.totalorder %s19, 0
      %p108 = por %p106, %p107
      %p109 = scmp.ne.s32.totalorder %s95, %s96
      %p110 = scmp.eq.s32.totalorder %s20, 4
      %p111 = por %p109, %p110
      %p113 = scmp.ne.s32.totalorder %s96, %s112
      %p114 = scmp.eq.s32.totalorder %s20, 0
      %p115 = por %p113, %p114
      %p116 = scmp.le.s32.totalorder 1, %s14
      %p117 = scmp.lt.s32.totalorder %s14, 6
      %p118 = pnand %p116, %p117
      %p119 = pneg %p118
      // Predicated region
      $region9: #{torch_ola.1} parent=5 // pred_check
        _
      $region10: #{torch_ola.1} parent=5 // pred_check_branch
        %121 = sbr.rel (%p118) target = $region12
      $region11: #{torch_ola.1} parent=5 // pred_region
        %s122 = ssub.s32 %s14, 1
      $region12: #{torch_ola.1} parent=5 // pred_fallthru
        _
      %p123 = scmp.lt.s32.totalorder %s14, 5
      // Predicated region
      $region13: #{torch_ola.1} parent=5 // pred_check
        %p124 = pneg %p123
      $region14: #{torch_ola.1} parent=5 // pred_check_branch
        %126 = sbr.rel (%p124) target = $region16
      $region15: #{torch_ola.1} parent=5 // pred_region
        // Predicated region
        $region17: #{torch_ola.1} parent=15 // pred_check
          %p127 = pneg %p38
        $region18: #{torch_ola.1} parent=15 // pred_check_branch
          %129 = sbr.rel (%p127) target = $region20
        $region19: #{torch_ola.1} parent=15 // pred_region
          %s130 = sand.u32 %s28, 1
          %s131 = scalar_lea.sflag [#allocation3], %s130
          %s132 = sand.u32 %s28, 1
          %s133 = smul.addr %s132, 32
          %s134 = scalar_lea.vmem [#allocation2], %s133
          %p135 = scmp.lt.s32.totalorder %s14, 3
          %s136 = scalar_select %p135, %s14, 3
          %s137 = smul.u32 2, %s136
          %s139 = ssub.s32 512, 512
          %140 = vsyncadd %s131, %s139
          %s141 = smul.addr %s137, 2
          %s142 = smul.addr %s141, 128
          %s143 = scalar_lea.hbm %s0, %s142
          %s144 = sshll.u32 %s134, 4
          %s145 = int_to_ptr.vmem [resolvable:$true] %s144
          %150 = dma.hbm_to_vmem [thread:$0]  %s143, 512, %s145, %s131, 256, 256, 16
        $region20: #{torch_ola.1} parent=15 // pred_fallthru
          _
        // Predicated region
        $region21: #{torch_ola.1} parent=15 // pred_check
          %p151 = pneg %p76
        $region22: #{torch_ola.1} parent=15 // pred_check_branch
          %153 = sbr.rel (%p151) target = $region24
        $region23: #{torch_ola.1} parent=15 // pred_region
          %s154 = sand.u32 %s66, 1
          %s155 = scalar_lea.sflag [#allocation5], %s154
          %s156 = sand.u32 %s66, 1
          %s157 = smul.addr %s156, 16
          %s158 = scalar_lea.vmem [#allocation4], %s157
          %s159 = smul.u32 %s14, 2
          %s160 = ssub.s32 %s159, 1
          %p161 = scmp.gt.s32.totalorder %s160, 0
          %s162 = scalar_select %p161, %s160, 0
          %p163 = scmp.lt.s32.totalorder %s162, 7
          %s164 = scalar_select %p163, %s162, 7
          %s166 = ssub.s32 256, 256
          %167 = vsyncadd %s155, %s166
          %s168 = smul.addr %s164, 2
          %s169 = smul.addr %s168, 128
          %s170 = scalar_lea.hbm %s1, %s169
          %s172 = sshll.u32 %s158, 4
          %s173 = int_to_ptr.vmem [resolvable:$true] %s172
          %175 = dma.hbm_to_vmem [thread:$0]  %s170, 256, %s173, %s155
        $region24: #{torch_ola.1} parent=15 // pred_fallthru
          _
      $region16: #{torch_ola.1} parent=5 // pred_fallthru
        _
      %p176 = scmp.le.s32.totalorder 1, %s14
      %p177 = scmp.lt.s32.totalorder %s14, 6
      %p178 = pnand %p176, %p177
      %p179 = pneg %p178
      // Predicated region
      $region25: #{torch_ola.1} parent=5 // pred_check
        _
      $region26: #{torch_ola.1} parent=5 // pred_check_branch
        %181 = sbr.rel (%p178) target = $region28
      $region27: #{torch_ola.1} parent=5 // pred_region
        %s182 = ssub.s32 %s14, 1
        %s183 = sand.u32 %s31, 1
        %s184 = scalar_lea.sflag [#allocation3], %s183
        %s185 = sand.u32 %s31, 1
        %s186 = smul.addr %s185, 32
        %s187 = scalar_lea.vmem [#allocation2], %s186
        // Predicated region
        $region29: #{torch_ola.1} parent=27 // pred_check
          %p188 = pneg %p44
        $region30: #{torch_ola.1} parent=27 // pred_check_branch
          %190 = sbr.rel (%p188) target = $region32
        $region31: #{torch_ola.1} parent=27 // pred_region
          %191 = dma.done %s184, 512
        $region32: #{torch_ola.1} parent=27 // pred_fallthru
          _
        %s192 = sand.u32 %s69, 1
        %s193 = scalar_lea.sflag [#allocation5], %s192
        %s194 = sand.u32 %s69, 1
        %s195 = smul.addr %s194, 16
        %s196 = scalar_lea.vmem [#allocation4], %s195
        // Predicated region
        $region33: #{torch_ola.1} parent=27 // pred_check
          %p197 = pneg %p82
        $region34: #{torch_ola.1} parent=27 // pred_check_branch
          %199 = sbr.rel (%p197) target = $region36
        $region35: #{torch_ola.1} parent=27 // pred_region
          %200 = dma.done %s193, 256
        $region36: #{torch_ola.1} parent=27 // pred_fallthru
          _
        %s201 = sand.u32 %s31, 1
        %s202 = scalar_lea.sflag [#allocation3], %s201
        %s203 = sand.u32 %s31, 1
        %s204 = smul.addr %s203, 32
        %s205 = scalar_lea.vmem [#allocation2], %s204
        %p206 = pneg %p44
        %p207 = pneg %p41
        %s208 = sand.u32 %s69, 1
        %s209 = scalar_lea.sflag [#allocation5], %s208
        %s210 = sand.u32 %s69, 1
        %s211 = smul.addr %s210, 16
        %s212 = scalar_lea.vmem [#allocation4], %s211
        %p213 = pneg %p82
        %p214 = pneg %p79
        %p215 = pneg %p108
        %p216 = pneg %p105
        %s217 = smul.u32 2, %s19
        %p218 = scmp.lt.s32.totalorder %s217, 9
        %s219 = scalar_select %p218, %s217, 9
        %s220 = smul.addr %s219, 8
        %s221 = scalar_lea.vmem %s2, %s220
        %p222 = scmp.lt.s32.totalorder %s19, 3
        %s223 = scalar_select %p222, %s19, 3
        %s224 = smul.u32 2, %s223
        %s225 = smul.u32 %s19, 2
        %s226 = ssub.s32 %s225, 1
        %p227 = scmp.gt.s32.totalorder %s226, 0
        %s228 = scalar_select %p227, %s226, 0
        %p229 = scmp.lt.s32.totalorder %s228, 7
        %s230 = scalar_select %p229, %s228, 7
        %s231 = smul.u32 2, %s19
        %p232 = scmp.lt.s32.totalorder %s231, 9
        %s233 = scalar_select %p232, %s231, 9
        %s234 = smul.addr %s233, 8
        %s235 = scalar_lea.vmem %s2, %s234
        %s236 = smul.u32 2, %s19
        %v237 = vlaneseq
        %v238 = vshrl.u32 %v237, 7
        %v239 = vadd.s32 %v238, 8
        %s240 = smul.u32 %s19, 16
        %v241 = vstv %s240
        %v242 = vadd.s32 %v241, %v238
        %v243 = vadd.s32 %v241, %v239
        %v244 = vld [vmem:[%s187] sm:$0xff]
        %v245 = vld [vmem:[%s187 + $0x10] sm:$0xff]
        %vm246 = vcmp.ge.s32.totalorder %v238, 0
        %vm247 = vcmp.ge.s32.totalorder %v239, 0
        %vm248 = vcmp.lt.s32.totalorder %v242, 64
        %vm249 = vcmp.lt.s32.totalorder %v243, 64
        %vm250 = vmand %vm246, %vm248
        %vm251 = vmand %vm247, %vm249
        %v252 = vsel %vm250, 1, 0
        %v253 = vsel %vm251, 1, 0
        %vm254 = vcmp.eq.s32.totalorder %v252, 1
        %vm255 = vcmp.eq.s32.totalorder %v253, 1
        %v256 = vsel %vm254, %v244, 0.0
        %v257 = vsel %vm255, %v245, 0.0
        %v258 = vld [vmem:[%s187 + $0x8] sm:$0xff]
        %v259 = vld [vmem:[%s187 + $0x18] sm:$0xff]
        %v260 = vrot.slane %v258, 7
        %v261 = vrot.slane %v259, 7
        %vm262 = vcmp.lt.s32.totalorder %v238, 1
        %v263 = vsel %vm262, %v260, %v261
        %v264 = vsel %vm262, %v261, %v260
        %vm265 = vcmp.ge.s32.totalorder %v238, 1
        %vm266 = vcmp.ge.s32.totalorder %v239, 1
        %v267 = vsub.s32 %v242, 1
        %v268 = vsub.s32 %v243, 1
        %vm269 = vcmp.lt.s32.totalorder %v267, 64
        %vm270 = vcmp.lt.s32.totalorder %v268, 64
        %vm271 = vmand %vm265, %vm269
        %vm272 = vmand %vm266, %vm270
        %v273 = vsel %vm271, 1, 0
        %v274 = vsel %vm272, 1, 0
        %vm275 = vcmp.eq.s32.totalorder %v273, 1
        %vm276 = vcmp.eq.s32.totalorder %v274, 1
        %v277 = vsel %vm275, %v264, 0.0
        %v278 = vsel %vm276, %v263, 0.0
        %v279 = vadd.f32 %v256, %v277
        %v280 = vadd.f32 %v257, %v278
        %v281 = vld [vmem:[%s196 + $0x8] sm:$0xff]
        %v282 = vrot.slane %v281, 7
        %vm283 = vcmp.ge.s32.totalorder %v267, 0
        %vm284 = vmand %vm262, %vm283
        %vm285 = vmand %vm284, %vm269
        %v286 = vsel %vm285, 1, 0
        %vm287 = vcmp.eq.s32.totalorder %v286, 1
        %v288 = vsel %vm287, %v282, 0.0
        %v289 = vadd.f32 %v288, 0.0
        %vm290 = vcmp.lt.s32.totalorder %v242, 1
        %v291 = vsel %vm290, %v242, 1
        %vm292 = vcmp.lt.s32.totalorder %v243, 1
        %v293 = vsel %vm292, %v243, 1
        %v294 = vsub.s32 %v242, 63
        %v295 = vsub.s32 %v243, 63
        %vm296 = vcmp.gt.s32.totalorder %v294, 0
        %v297 = vsel %vm296, %v294, 0
        %vm298 = vcmp.gt.s32.totalorder %v295, 0
        %v299 = vsel %vm298, %v295, 0
        %v300 = vsub.s32 %v291, %v297
        %v301 = vsub.s32 %v293, %v299
        %v302 = vadd.s32 %v300, 1
        %v303 = vadd.s32 %v301, 1
        %vm304 = vcmp.gt.s32.totalorder %v302, 0
        %v305 = vsel %vm304, %v302, 0
        %vm306 = vcmp.gt.s32.totalorder %v303, 0
        %v307 = vsel %vm306, %v303, 0
        %vm308 = vcmp.gt.s32.totalorder %v305, 1
        %v309 = vsel %vm308, %v305, 1
        %vm310 = vcmp.gt.s32.totalorder %v307, 1
        %v311 = vsel %vm310, %v307, 1
        %v312 = vcvt.s32.f32 %v309
        %v313 = vcvt.s32.f32 %v311
        %v314 = vrcp.pop %v312
        %v315 = vmul.f32 1.0, %v314
        %v316 = vrcp.pop %v313
        %v317 = vmul.f32 1.0, %v316
        %v318 = vadd.f32 %v279, %v289
        %v319 = vmul.f32 %v318, %v315
        %320 = vst [vmem:[%s235] sm:$0xff] %v319
        %v321 = vmul.f32 %v280, %v317
        %322 = vst [vmem:[%s235 + $0x8] sm:$0xff] %v321
        %s323 = smul.u32 2, %s19
        %p324 = scmp.lt.s32.totalorder %s323, 9
        %s325 = scalar_select %p324, %s323, 9
        %s326 = smul.addr %s325, 8
        %s327 = scalar_lea.vmem %s2, %s326
        // Predicated region
        $region37: #{torch_ola.1} parent=27 // pred_check
          %p328 = pneg %p105
        $region38: #{torch_ola.1} parent=27 // pred_check_branch
          %330 = sbr.rel (%p328) target = $region40
        $region39: #{torch_ola.1} parent=27 // pred_region
          %s331 = smul.u32 2, %s19
        $region40: #{torch_ola.1} parent=27 // pred_fallthru
          _
      $region28: #{torch_ola.1} parent=5 // pred_fallthru
        _
      %p332 = scmp.le.s32.totalorder 2, %s14
      // Predicated region
      $region41: #{torch_ola.1} parent=5 // pred_check
        %p333 = pneg %p332
      $region42: #{torch_ola.1} parent=5 // pred_check_branch
        %335 = sbr.rel (%p333) target = $region44
      $region43: #{torch_ola.1} parent=5 // pred_region
        %s336 = ssub.s32 %s14, 2
        // Predicated region
        $region45: #{torch_ola.1} parent=43 // pred_check
          %p337 = pneg %p111
        $region46: #{torch_ola.1} parent=43 // pred_check_branch
          %339 = sbr.rel (%p337) target = $region48
        $region47: #{torch_ola.1} parent=43 // pred_region
          %s340 = smul.u32 2, %s20
          %p341 = scmp.lt.s32.totalorder %s340, 9
          %s342 = scalar_select %p341, %s340, 9
          %s343 = smul.addr %s342, 8
          %s344 = scalar_lea.vmem %s2, %s343
        $region48: #{torch_ola.1} parent=43 // pred_fallthru
          _
      $region44: #{torch_ola.1} parent=5 // pred_fallthru
        _
    $region6: #{torch_ola.1} parent=1 // loop_footer
      %s18 = sadd.s32 1, %s14
    $region7: #{torch_ola.1} parent=1 // loop_footer_branch
      %13 = sbr.rel target = $region3
    $region8: #{torch_ola.1} parent=1 // loop_exit
      _
    %345 = vsyncpa [#allocation3], 1
    %s346 = scalar_lea.sflag [#allocation3], 1
    %347 = vsyncpa %s346, 1
    %348 = vsyncpa [#allocation5], 1
    %s349 = scalar_lea.sflag [#allocation5], 1
    %350 = vsyncpa %s349, 1

</llo_original>
